<compile_context>
chip_gen: v7x
topology: tpu7x:2x2x1
jax: 0.10.0
libtpu: 0.0.40
codegen_flags: <defaults>
</compile_context>

<pallas_src>
import math
import functools

import jax
import jax.numpy as jnp
from jax import lax
from jax.experimental import pallas as pl
from jax.experimental.pallas import tpu as pltpu


# ----------------------------------------------------------------------------
# Fused kernel: one batch element per grid step, all heads stacked in-kernel.
# ----------------------------------------------------------------------------
def mha_fused_kernel(x_ref, w_ref, mask_ref, o_ref, qkv_ref, *, nheads, scale):
    """
    x_ref:    (1, S, D)      bf16  input slab for this batch element
    w_ref:    (D, 3D)        bf16  fused QKV weight (constant block -> resident)
    mask_ref: (H*S, H*S)     f32   block-diagonal additive mask (resident const)
    o_ref:    (1, H, S, Dh)  f32   contiguous head-major output
    qkv_ref:  (S, 3D)        f32   VMEM scratch holding the projection
    """
    S = x_ref.shape[1]
    D = x_ref.shape[2]
    Dh = D // nheads

    # --- QKV projection on the MXU: bf16 operands, f32 accumulation ---
    qkv_ref[...] = jnp.dot(
        x_ref[0], w_ref[...], preferred_element_type=jnp.float32
    )

    # --- stack heads along rows: (S, D) head-blocked columns -> (H*S, Dh) ---
    def stack_heads(col0):
        return jnp.concatenate(
            [qkv_ref[:, col0 + h * Dh: col0 + (h + 1) * Dh]
             for h in range(nheads)],
            axis=0,
        )

    q = stack_heads(0).astype(jnp.bfloat16)          # (H*S, Dh)
    k = stack_heads(D).astype(jnp.bfloat16)          # (H*S, Dh)
    v = stack_heads(2 * D).astype(jnp.bfloat16)      # (H*S, Dh)

    # --- single stacked scores matmul; mask kills cross-head blocks ---
    scores = lax.dot_general(
        q, k, (((1,), (1,)), ((), ())),               # q @ k^T over Dh
        preferred_element_type=jnp.float32,
    )                                                 # (H*S, H*S) f32
    scores = scores * scale + mask_ref[...]

    # --- softmax kept in f32 (no bf16 VPU/EUP on v5e) ---
    m = jnp.max(scores, axis=-1, keepdims=True)
    p = jnp.exp(scores - m)                           # cross-head blocks -> 0
    denom = jnp.sum(p, axis=-1, keepdims=True)
    p = p * pl.reciprocal(denom, approx=True)         # EUP slot, not VALU divide

    # --- single P@V matmul; rows already (H, S)-stacked ---
    out = jnp.dot(p.astype(jnp.bfloat16), v,
                  preferred_element_type=jnp.float32)  # (H*S, Dh)
    o_ref[...] = out.reshape(1, nheads, S, Dh).astype(o_ref.dtype)


# ----------------------------------------------------------------------------
# Wrapper
# ----------------------------------------------------------------------------
def multi_head_attention(x, w_qkv, nheads):
    """x: (B, S, D) float32; w_qkv: (D, 3D) (already-transposed Linear weight)."""
    B, S, D = x.shape
    assert D % nheads == 0
    Dh = D // nheads
    HS = nheads * S
    scale = 1.0 / math.sqrt(Dh)

    # bf16 MXU operands (f32 accumulation in-kernel). Wrapper-side cast halves
    # the dominant HBM traffic (the QKV weight) and ~2x's MXU rate on v6e/v7x.
    x_bf16 = x.astype(jnp.bfloat16)
    w_bf16 = w_qkv.astype(jnp.bfloat16)

    # Hoisted constant block-diagonal additive mask over stacked head rows.
    head_id = jnp.arange(HS, dtype=jnp.int32) // S
    mask = jnp.where(head_id[:, None] == head_id[None, :],
                     0.0, -1e30).astype(jnp.float32)

    kernel = functools.partial(mha_fused_kernel, nheads=nheads, scale=scale)

    cost = pl.CostEstimate(
        flops=2 * B * S * D * (3 * D) + 4 * B * HS * HS * Dh,
        transcendentals=B * HS * HS,
        bytes_accessed=2 * (B * S * D + D * 3 * D)
        + 4 * (HS * HS + B * nheads * S * Dh),
    )

    attn = pl.pallas_call(
        kernel,
        out_shape=jax.ShapeDtypeStruct((B, nheads, S, Dh), jnp.float32),
        grid=(B,),
        in_specs=[
            pl.BlockSpec((1, S, D), lambda b: (b, 0, 0)),
            pl.BlockSpec((D, 3 * D), lambda b: (0, 0)),
            pl.BlockSpec((HS, HS), lambda b: (0, 0)),
        ],
        out_specs=pl.BlockSpec((1, nheads, S, Dh), lambda b: (b, 0, 0, 0)),
        scratch_shapes=[pltpu.VMEM((S, 3 * D), jnp.float32)],
        compiler_params=pltpu.CompilerParams(
            dimension_semantics=("parallel",),
            vmem_limit_bytes=32 * 1024 * 1024,
        ),
        cost_estimate=cost,
    )(x_bf16, w_bf16, mask)

    # PyTorch: attention_output.view(B, S, H*Dh) on the contiguous (B, H, S, Dh)
    # tensor -> raw row-major reinterpretation (free), reproduced exactly.
    return attn.reshape(B, S, nheads * Dh)


# ----------------------------------------------------------------------------
# Pure-JAX reference (same math / same quirky view) for a sanity check.
# ----------------------------------------------------------------------------
def reference(x, w_qkv, nheads):
    B, S, D = x.shape
    Dh = D // nheads
    qkv = x @ w_qkv
    q, k, v = jnp.split(qkv, 3, axis=-1)
    q = q.reshape(B, S, nheads, Dh).transpose(0, 2, 1, 3)
    k = k.reshape(B, S, nheads, Dh).transpose(0, 2, 1, 3)
    v = v.reshape(B, S, nheads, Dh).transpose(0, 2, 1, 3)
    scores = jnp.einsum("bhqd,bhkd->bhqk", q, k) / math.sqrt(Dh)
    p = jax.nn.softmax(scores, axis=-1)
    out = jnp.einsum("bhqk,bhkd->bhqd", p, v)
    return out.reshape(B, S, nheads * Dh)


if __name__ == "__main__":
    nheads = 8
    dimension = 256          # module default; dimension % nheads == 0
    B, S = 2, 8

    key = jax.random.PRNGKey(0)
    kx, kw = jax.random.split(key)

    # nn.Linear(dimension, 3*dimension, bias=False) weight: (3D, D);
    # forward uses x @ W^T.
    bound = 1.0 / math.sqrt(dimension)
    w = jax.random.uniform(
        kw, (3 * dimension, dimension), jnp.float32, minval=-bound, maxval=bound
    )
    w_qkv = w.T  # (D, 3D)

    x = jax.random.normal(kx, (B, S, dimension), jnp.float32)

    out = jax.block_until_ready(multi_head_attention(x, w_qkv, nheads))
    ref = reference(x, w_qkv, nheads)

    assert out.shape == (B, S, dimension), out.shape
    # bf16 MXU operands (f32 accumulation) + approx EUP reciprocal in softmax
    # => slightly looser tolerance than an exact-f32 pipeline.
    err = float(jnp.max(jnp.abs(out - ref)))
    assert jnp.allclose(out, ref, atol=3e-2, rtol=3e-2), err

    print("KERNEL_OK")
</pallas_src>

<mosaic_0001>
module attributes {stable_mosaic.version = 11 : i64} {
  func.func @mha_fused_kernel(%arg0: i32, %arg1: memref<1x8x256xbf16, #tpu.memory_space<vmem>>, %arg2: memref<256x768xbf16, #tpu.memory_space<vmem>>, %arg3: memref<64x64xf32, #tpu.memory_space<vmem>>, %arg4: memref<1x8x8x32xf32, #tpu.memory_space<vmem>>, %arg5: memref<8x768xf32, #tpu.memory_space<vmem>>) attributes {dimension_semantics = [#tpu.dimension_semantics<parallel>], iteration_bounds = array<i64: 2>, scalar_prefetch = 0 : i64, scratch_operands = 1 : i64, tpu.core_type = #tpu.core_type<tc>, window_params = [{transform_indices = @transform_0, window_bounds = array<i64: 1, 8, 256>}, {pipeline_mode = #tpu.pipeline_mode<synchronous>, transform_indices = @transform_1, window_bounds = array<i64: 256, 768>}, {pipeline_mode = #tpu.pipeline_mode<synchronous>, transform_indices = @transform_2, window_bounds = array<i64: 64, 64>}, {transform_indices = @transform_3, window_bounds = array<i64: 1, 8, 8, 32>}]} {
    %c0 = arith.constant 0 : index
    %c0_0 = arith.constant 0 : index
    %c0_1 = arith.constant 0 : index
    %0 = vector.load %arg1[%c0, %c0_0, %c0_1] : memref<1x8x256xbf16, #tpu.memory_space<vmem>>, vector<1x8x256xbf16>
    %1 = vector.shape_cast %0 : vector<1x8x256xbf16> to vector<8x256xbf16>
    %c0_2 = arith.constant 0 : index
    %c0_3 = arith.constant 0 : index
    %2 = vector.load %arg2[%c0_2, %c0_3] : memref<256x768xbf16, #tpu.memory_space<vmem>>, vector<256x768xbf16>
    %cst = arith.constant dense<0.000000e+00> : vector<8x768xf32>
    %3 = tpu.matmul %1, %2, %cst {dimension_numbers = #tpu.dot_dimension_numbers<[1], [0], [0], [1], [0, 0, 1, 1], [], []>} : vector<8x256xbf16>, vector<256x768xbf16>, vector<8x768xf32> -> vector<8x768xf32>
    %c0_4 = arith.constant 0 : index
    %c0_5 = arith.constant 0 : index
    %4 = vector.load %arg5[%c0_4, %c0_5] : memref<8x768xf32, #tpu.memory_space<vmem>>, vector<8x768xf32>
    tpu.vector_store %arg5[%c0_4, %c0_5], %3 {strides = array<i32>} : memref<8x768xf32, #tpu.memory_space<vmem>>, vector<8x768xf32>,
    %c0_6 = arith.constant 0 : index
    %c0_7 = arith.constant 0 : index
    %5 = vector.load %arg5[%c0_6, %c0_7] : memref<8x768xf32, #tpu.memory_space<vmem>>, vector<8x32xf32>
    %c0_8 = arith.constant 0 : index
    %c32 = arith.constant 32 : index
    %6 = vector.load %arg5[%c0_8, %c32] : memref<8x768xf32, #tpu.memory_space<vmem>>, vector<8x32xf32>
    %c0_9 = arith.constant 0 : index
    %c64 = arith.constant 64 : index
    %7 = vector.load %arg5[%c0_9, %c64] : memref<8x768xf32, #tpu.memory_space<vmem>>, vector<8x32xf32>
    %c0_10 = arith.constant 0 : index
    %c96 = arith.constant 96 : index
    %8 = vector.load %arg5[%c0_10, %c96] : memref<8x768xf32, #tpu.memory_space<vmem>>, vector<8x32xf32>
    %c0_11 = arith.constant 0 : index
    %c128 = arith.constant 128 : index
    %9 = vector.load %arg5[%c0_11, %c128] : memref<8x768xf32, #tpu.memory_space<vmem>>, vector<8x32xf32>
    %c0_12 = arith.constant 0 : index
    %c160 = arith.constant 160 : index
    %10 = vector.load %arg5[%c0_12, %c160] : memref<8x768xf32, #tpu.memory_space<vmem>>, vector<8x32xf32>
    %c0_13 = arith.constant 0 : index
    %c192 = arith.constant 192 : index
    %11 = vector.load %arg5[%c0_13, %c192] : memref<8x768xf32, #tpu.memory_space<vmem>>, vector<8x32xf32>
    %c0_14 = arith.constant 0 : index
    %c224 = arith.constant 224 : index
    %12 = vector.load %arg5[%c0_14, %c224] : memref<8x768xf32, #tpu.memory_space<vmem>>, vector<8x32xf32>
    %13 = tpu.concatenate %5, %6, %7, %8, %9, %10, %11, %12 in 0 : vector<8x32xf32>, vector<8x32xf32>, vector<8x32xf32>, vector<8x32xf32>, vector<8x32xf32>, vector<8x32xf32>, vector<8x32xf32>, vector<8x32xf32> -> vector<64x32xf32>
    %14 = arith.truncf %13 : vector<64x32xf32> to vector<64x32xbf16>
    %c0_15 = arith.constant 0 : index
    %c256 = arith.constant 256 : index
    %15 = vector.load %arg5[%c0_15, %c256] : memref<8x768xf32, #tpu.memory_space<vmem>>, vector<8x32xf32>
    %c0_16 = arith.constant 0 : index
    %c288 = arith.constant 288 : index
    %16 = vector.load %arg5[%c0_16, %c288] : memref<8x768xf32, #tpu.memory_space<vmem>>, vector<8x32xf32>
    %c0_17 = arith.constant 0 : index
    %c320 = arith.constant 320 : index
    %17 = vector.load %arg5[%c0_17, %c320] : memref<8x768xf32, #tpu.memory_space<vmem>>, vector<8x32xf32>
    %c0_18 = arith.constant 0 : index
    %c352 = arith.constant 352 : index
    %18 = vector.load %arg5[%c0_18, %c352] : memref<8x768xf32, #tpu.memory_space<vmem>>, vector<8x32xf32>
    %c0_19 = arith.constant 0 : index
    %c384 = arith.constant 384 : index
    %19 = vector.load %arg5[%c0_19, %c384] : memref<8x768xf32, #tpu.memory_space<vmem>>, vector<8x32xf32>
    %c0_20 = arith.constant 0 : index
    %c416 = arith.constant 416 : index
    %20 = vector.load %arg5[%c0_20, %c416] : memref<8x768xf32, #tpu.memory_space<vmem>>, vector<8x32xf32>
    %c0_21 = arith.constant 0 : index
    %c448 = arith.constant 448 : index
    %21 = vector.load %arg5[%c0_21, %c448] : memref<8x768xf32, #tpu.memory_space<vmem>>, vector<8x32xf32>
    %c0_22 = arith.constant 0 : index
    %c480 = arith.constant 480 : index
    %22 = vector.load %arg5[%c0_22, %c480] : memref<8x768xf32, #tpu.memory_space<vmem>>, vector<8x32xf32>
    %23 = tpu.concatenate %15, %16, %17, %18, %19, %20, %21, %22 in 0 : vector<8x32xf32>, vector<8x32xf32>, vector<8x32xf32>, vector<8x32xf32>, vector<8x32xf32>, vector<8x32xf32>, vector<8x32xf32>, vector<8x32xf32> -> vector<64x32xf32>
    %24 = arith.truncf %23 : vector<64x32xf32> to vector<64x32xbf16>
    %c0_23 = arith.constant 0 : index
    %c512 = arith.constant 512 : index
    %25 = vector.load %arg5[%c0_23, %c512] : memref<8x768xf32, #tpu.memory_space<vmem>>, vector<8x32xf32>
    %c0_24 = arith.constant 0 : index
    %c544 = arith.constant 544 : index
    %26 = vector.load %arg5[%c0_24, %c544] : memref<8x768xf32, #tpu.memory_space<vmem>>, vector<8x32xf32>
    %c0_25 = arith.constant 0 : index
    %c576 = arith.constant 576 : index
    %27 = vector.load %arg5[%c0_25, %c576] : memref<8x768xf32, #tpu.memory_space<vmem>>, vector<8x32xf32>
    %c0_26 = arith.constant 0 : index
    %c608 = arith.constant 608 : index
    %28 = vector.load %arg5[%c0_26, %c608] : memref<8x768xf32, #tpu.memory_space<vmem>>, vector<8x32xf32>
    %c0_27 = arith.constant 0 : index
    %c640 = arith.constant 640 : index
    %29 = vector.load %arg5[%c0_27, %c640] : memref<8x768xf32, #tpu.memory_space<vmem>>, vector<8x32xf32>
    %c0_28 = arith.constant 0 : index
    %c672 = arith.constant 672 : index
    %30 = vector.load %arg5[%c0_28, %c672] : memref<8x768xf32, #tpu.memory_space<vmem>>, vector<8x32xf32>
    %c0_29 = arith.constant 0 : index
    %c704 = arith.constant 704 : index
    %31 = vector.load %arg5[%c0_29, %c704] : memref<8x768xf32, #tpu.memory_space<vmem>>, vector<8x32xf32>
    %c0_30 = arith.constant 0 : index
    %c736 = arith.constant 736 : index
    %32 = vector.load %arg5[%c0_30, %c736] : memref<8x768xf32, #tpu.memory_space<vmem>>, vector<8x32xf32>
    %33 = tpu.concatenate %25, %26, %27, %28, %29, %30, %31, %32 in 0 : vector<8x32xf32>, vector<8x32xf32>, vector<8x32xf32>, vector<8x32xf32>, vector<8x32xf32>, vector<8x32xf32>, vector<8x32xf32>, vector<8x32xf32> -> vector<64x32xf32>
    %34 = arith.truncf %33 : vector<64x32xf32> to vector<64x32xbf16>
    %cst_31 = arith.constant dense<0.000000e+00> : vector<64x64xf32>
    %35 = tpu.matmul %14, %24, %cst_31 {dimension_numbers = #tpu.dot_dimension_numbers<[1], [1], [0], [0], [0, 0, 1, 0], [], []>} : vector<64x32xbf16>, vector<64x32xbf16>, vector<64x64xf32> -> vector<64x64xf32>
    %cst_32 = arith.constant 0.176776692 : f32
    %36 = vector.broadcast %cst_32 : f32 to vector<64x64xf32>
    %37 = arith.mulf %35, %36 : vector<64x64xf32>
    %c0_33 = arith.constant 0 : index
    %c0_34 = arith.constant 0 : index
    %38 = vector.load %arg3[%c0_33, %c0_34] : memref<64x64xf32, #tpu.memory_space<vmem>>, vector<64x64xf32>
    %39 = arith.addf %37, %38 : vector<64x64xf32>
    %cst_35 = arith.constant dense<0xFF800000> : vector<64xf32>
    %40 = vector.multi_reduction <maximumf>, %39, %cst_35 [1] : vector<64x64xf32> to vector<64xf32>
    %41 = vector.shape_cast %40 : vector<64xf32> to vector<64x1xf32>
    %42 = vector.broadcast %41 : vector<64x1xf32> to vector<64x64xf32>
    %43 = arith.subf %39, %42 : vector<64x64xf32>
    %44 = math.exp %43 : vector<64x64xf32>
    %cst_36 = arith.constant dense<0.000000e+00> : vector<64xf32>
    %45 = vector.multi_reduction <add>, %44, %cst_36 [1] : vector<64x64xf32> to vector<64xf32>
    %46 = vector.shape_cast %45 : vector<64xf32> to vector<64x1xf32>
    %47 = tpu.reciprocal %46 {approx = true} : vector<64x1xf32> -> vector<64x1xf32>
    %48 = vector.broadcast %47 : vector<64x1xf32> to vector<64x64xf32>
    %49 = arith.mulf %44, %48 : vector<64x64xf32>
    %50 = arith.truncf %49 : vector<64x64xf32> to vector<64x64xbf16>
    %cst_37 = arith.constant dense<0.000000e+00> : vector<64x32xf32>
    %51 = tpu.matmul %50, %34, %cst_37 {dimension_numbers = #tpu.dot_dimension_numbers<[1], [0], [0], [1], [0, 0, 1, 1], [], []>} : vector<64x64xbf16>, vector<64x32xbf16>, vector<64x32xf32> -> vector<64x32xf32>
    %52 = vector.shape_cast %51 : vector<64x32xf32> to vector<1x8x8x32xf32>
    %c0_38 = arith.constant 0 : index
    %c0_39 = arith.constant 0 : index
    %c0_40 = arith.constant 0 : index
    %c0_41 = arith.constant 0 : index
    %53 = vector.load %arg4[%c0_38, %c0_39, %c0_40, %c0_41] : memref<1x8x8x32xf32, #tpu.memory_space<vmem>>, vector<1x8x8x32xf32>
    tpu.vector_store %arg4[%c0_38, %c0_39, %c0_40, %c0_41], %52 {strides = array<i32>} : memref<1x8x8x32xf32, #tpu.memory_space<vmem>>, vector<1x8x8x32xf32>,
    return
  }
  func.func @transform_0(%arg0: i32) -> (i32, i32, i32) {
    %c0_i32 = arith.constant 0 : i32
    %c0_i32_0 = arith.constant 0 : i32
    %c0_i32_1 = arith.constant 0 : i32
    return %arg0, %c0_i32, %c0_i32_0 : i32, i32, i32
  }
  func.func @transform_1(%arg0: i32) -> (i32, i32) {
    %c0_i32 = arith.constant 0 : i32
    %c0_i32_0 = arith.constant 0 : i32
    %c0_i32_1 = arith.constant 0 : i32
    return %c0_i32, %c0_i32_0 : i32, i32
  }
  func.func @transform_2(%arg0: i32) -> (i32, i32) {
    %c0_i32 = arith.constant 0 : i32
    %c0_i32_0 = arith.constant 0 : i32
    %c0_i32_1 = arith.constant 0 : i32
    return %c0_i32, %c0_i32_0 : i32, i32
  }
  func.func @transform_3(%arg0: i32) -> (i32, i32, i32, i32) {
    %c0_i32 = arith.constant 0 : i32
    %c0_i32_0 = arith.constant 0 : i32
    %c0_i32_1 = arith.constant 0 : i32
    %c0_i32_2 = arith.constant 0 : i32
    return %arg0, %c0_i32, %c0_i32_0, %c0_i32_1 : i32, i32, i32, i32
  }
}

</mosaic_0001>

<llo_original>
// kernel: tpu_custom_call.1
$region0: #{tpu_custom_call.1}
  #allocation0 [shape = 'u32[]', space=smem, size = 0x4, offset = 0x4, fixed_abs, tag = 'smem constant byte address 0x4 - core index']
  #allocation1 [shape = 'u32[144,128]{1,0:T(1,128)}', space=vmem, size = 0x12000, scoped, tag = 'internal scratch']
  #allocation2 [shape = 'f32[8,768]{1,0:T(8,128)}', space=vmem, size = 0x6000, scoped, tag = 'scratch operand']
  %s0 = inlined_call_operand.hbm [shape: bf16[2,8,256], index: 0, kind: input, shape index: {}]
  %s1 = inlined_call_operand.hbm [shape: bf16[256,768], index: 1, kind: input, shape index: {}]
  %s2 = inlined_call_operand.hbm [shape: f32[64,64], index: 2, kind: input, shape index: {}]
  %s3 = inlined_call_operand.hbm [shape: f32[2,8,8,32], index: 3, kind: output, shape index: {}]
  %s4 = sld [smem:[#allocation0]]
  $region57: #{tpu_custom_call.1} parent=0
    _
  %s6 = ssub.s32 1, %s4
  %s7 = scalar_select 0, %s6, %s4
  $region1: #{tpu_custom_call.1} parent=0
    #allocation3 [shape = 'u8[8192]{0}', space=vmem, size = 0x2000, scoped, tag = 'input window, operand 0']
    #allocation4 [shape = 's32[2]{0}', space=sflag, size = 0x8, scoped, tag = 'scoped memory for tpu_custom_call.1']
    #allocation5 [shape = 's32[2]{0}', space=sflag, size = 0x8, scoped, tag = 'scoped memory for tpu_custom_call.1']
    #allocation6 [shape = 'u8[393216]{0}', space=vmem, size = 0x60000, scoped, tag = 'input window, operand 1, single buffered']
    #allocation7 [shape = 's32[1]{0}', space=sflag, size = 0x4, scoped, tag = 'scoped memory for tpu_custom_call.1']
    #allocation8 [shape = 'u8[32768]{0}', space=vmem, size = 0x8000, scoped, tag = 'input window, operand 2, single buffered']
    #allocation9 [shape = 'u8[65536]{0}', space=vmem, size = 0x10000, scoped, tag = 'output window, operand 0']
    %8 = vsyncpa [#allocation4], 0
    %s9 = scalar_lea.sflag [#allocation4], 1
    %10 = vsyncpa %s9, 0
    %11 = vsyncpa [#allocation7], 0
    %12 = vsyncpa [#allocation5], 0
    %s13 = scalar_lea.sflag [#allocation5], 1
    %14 = vsyncpa %s13, 0
    loop: start=0, step=1, limit=4
    $region2: #{tpu_custom_call.1} parent=1 // loop_pre_header
      _
    $region3: #{tpu_custom_call.1} parent=1 // loop_header
      %s16 = sphi 0, %s20
      %p17 = scmp.ge.s32.totalorder %s16, 4
      %s26 = sphi 0, %s28
      %s29 = sphi 0, %s26
      %s30 = sphi 0, %s29
      %s46 = sphi 0, %s30
      %s50 = sphi 0, %s50
      %s52 = sphi 0, %s50
      %s53 = sphi 0, %s52
      %s67 = sphi 0, %s53
      %s71 = sphi 0, %s71
      %s73 = sphi 0, %s71
      %s74 = sphi 0, %s73
      %s88 = sphi 0, %s74
      %s94 = sphi 0, %s96
      %s97 = sphi 0, %s94
      %s98 = sphi 0, %s97
      %s114 = sphi 0, %s98
    $region4: #{tpu_custom_call.1} parent=1 // loop_header_branch
      %19 = sbr.rel (%p17) target = $region8
    $region5: #{tpu_custom_call.1} parent=1 // loop_body
      %s21 = ssub.s32 %s16, 1
      %s22 = ssub.s32 %s16, 2
      %s23 = sadd.s32 %s16, 1
      %s24 = ssub.s32 %s16, %s23
      %p25 = scmp.eq.s32.totalorder %s24, 0
      %s27 = sadd.s32 %s26, 1
      %s28 = scalar_select %p25, %s26, %s27
      %p31 = pneg %p25
      %p32 = scmp.eq.s32.totalorder %s16, 1
      %p33 = por %p31, %p32
      %p34 = scmp.ne.s32.totalorder %s26, %s29
      %p35 = scmp.eq.s32.totalorder %s16, 0
      %p36 = por %p34, %p35
      %p37 = scmp.ne.s32.totalorder %s26, %s29
      %p38 = scmp.eq.s32.totalorder %s21, 1
      %p39 = por %p37, %p38
      %p40 = scmp.ne.s32.totalorder %s29, %s30
      %p41 = scmp.eq.s32.totalorder %s21, 0
      %p42 = por %p40, %p41
      %p43 = scmp.ne.s32.totalorder %s29, %s30
      %p44 = scmp.eq.s32.totalorder %s22, 1
      %p45 = por %p43, %p44
      %p47 = scmp.ne.s32.totalorder %s30, %s46
      %p48 = scmp.eq.s32.totalorder %s22, 0
      %p49 = por %p47, %p48
      %s51 = sadd.s32 %s50, 1
      %p54 = scmp.eq.s32.totalorder %s16, 1
      %p55 = scmp.ne.s32.totalorder %s50, %s52
      %p56 = scmp.eq.s32.totalorder %s16, 0
      %p57 = por %p55, %p56
      %p58 = scmp.ne.s32.totalorder %s50, %s52
      %p59 = scmp.eq.s32.totalorder %s21, 1
      %p60 = por %p58, %p59
      %p61 = scmp.ne.s32.totalorder %s52, %s53
      %p62 = scmp.eq.s32.totalorder %s21, 0
      %p63 = por %p61, %p62
      %p64 = scmp.ne.s32.totalorder %s52, %s53
      %p65 = scmp.eq.s32.totalorder %s22, 1
      %p66 = por %p64, %p65
      %p68 = scmp.ne.s32.totalorder %s53, %s67
      %p69 = scmp.eq.s32.totalorder %s22, 0
      %p70 = por %p68, %p69
      %s72 = sadd.s32 %s71, 1
      %p75 = scmp.eq.s32.totalorder %s16, 1
      %p76 = scmp.ne.s32.totalorder %s71, %s73
      %p77 = scmp.eq.s32.totalorder %s16, 0
      %p78 = por %p76, %p77
      %p79 = scmp.ne.s32.totalorder %s71, %s73
      %p80 = scmp.eq.s32.totalorder %s21, 1
      %p81 = por %p79, %p80
      %p82 = scmp.ne.s32.totalorder %s73, %s74
      %p83 = scmp.eq.s32.totalorder %s21, 0
      %p84 = por %p82, %p83
      %p85 = scmp.ne.s32.totalorder %s73, %s74
      %p86 = scmp.eq.s32.totalorder %s22, 1
      %p87 = por %p85, %p86
      %p89 = scmp.ne.s32.totalorder %s74, %s88
      %p90 = scmp.eq.s32.totalorder %s22, 0
      %p91 = por %p89, %p90
      %s92 = ssub.s32 %s16, %s23
      %p93 = scmp.eq.s32.totalorder %s92, 0
      %s95 = sadd.s32 %s94, 1
      %s96 = scalar_select %p93, %s94, %s95
      %p99 = pneg %p93
      %p100 = scmp.eq.s32.totalorder %s16, 1
      %p101 = por %p99, %p100
      %p102 = scmp.ne.s32.totalorder %s94, %s97
      %p103 = scmp.eq.s32.totalorder %s16, 0
      %p104 = por %p102, %p103
      %p105 = scmp.ne.s32.totalorder %s94, %s97
      %p106 = scmp.eq.s32.totalorder %s21, 1
      %p107 = por %p105, %p106
      %p108 = scmp.ne.s32.totalorder %s97, %s98
      %p109 = scmp.eq.s32.totalorder %s21, 0
      %p110 = por %p108, %p109
      %p111 = scmp.ne.s32.totalorder %s97, %s98
      %p112 = scmp.eq.s32.totalorder %s22, 1
      %p113 = por %p111, %p112
      %p115 = scmp.ne.s32.totalorder %s98, %s114
      %p116 = scmp.eq.s32.totalorder %s22, 0
      %p117 = por %p115, %p116
      %p118 = scmp.le.s32.totalorder 1, %s16
      %p119 = scmp.lt.s32.totalorder %s16, 3
      %p120 = pnand %p118, %p119
      %p121 = pneg %p120
      // Predicated region
      $region9: #{tpu_custom_call.1} parent=5 // pred_check
        _
      $region10: #{tpu_custom_call.1} parent=5 // pred_check_branch
        %123 = sbr.rel (%p120) target = $region12
      $region11: #{tpu_custom_call.1} parent=5 // pred_region
        %s124 = ssub.s32 %s16, 1
        // Predicated region
        $region13: #{tpu_custom_call.1} parent=11 // pred_check
          %p125 = pneg %p63
        $region14: #{tpu_custom_call.1} parent=11 // pred_check_branch
          %127 = sbr.rel (%p125) target = $region16
        $region15: #{tpu_custom_call.1} parent=11 // pred_region
          %s129 = ssub.s32 12288, 12288
          %130 = vsyncadd [#allocation7], %s129
          %s131 = sshll.u32 [#allocation6], 4
          %s132 = int_to_ptr.vmem [resolvable:$true] %s131
          %137 = dma.hbm_to_vmem [thread:$0]  %s1, 12288, %s132, [#allocation7], 384, 384, 24
        $region16: #{tpu_custom_call.1} parent=11 // pred_fallthru
          _
        // Predicated region
        $region17: #{tpu_custom_call.1} parent=11 // pred_check
          %p138 = pneg %p84
        $region18: #{tpu_custom_call.1} parent=11 // pred_check_branch
          %140 = sbr.rel (%p138) target = $region20
        $region19: #{tpu_custom_call.1} parent=11 // pred_region
          %s142 = ssub.s32 1024, 1024
          %143 = vsyncadd [#allocation7], %s142
          %s144 = sshll.u32 [#allocation8], 4
          %s145 = int_to_ptr.vmem [resolvable:$true] %s144
          %150 = dma.hbm_to_vmem [thread:$0]  %s2, 1024, %s145, [#allocation7], 128, 128, 8
        $region20: #{tpu_custom_call.1} parent=11 // pred_fallthru
          _
      $region12: #{tpu_custom_call.1} parent=5 // pred_fallthru
        _
      %p151 = scmp.lt.s32.totalorder %s16, 2
      // Predicated region
      $region21: #{tpu_custom_call.1} parent=5 // pred_check
        %p152 = pneg %p151
      $region22: #{tpu_custom_call.1} parent=5 // pred_check_branch
        %154 = sbr.rel (%p152) target = $region24
      $region23: #{tpu_custom_call.1} parent=5 // pred_region
        // Predicated region
        $region25: #{tpu_custom_call.1} parent=23 // pred_check
          %p155 = pneg %p36
        $region26: #{tpu_custom_call.1} parent=23 // pred_check_branch
          %157 = sbr.rel (%p155) target = $region28
        $region27: #{tpu_custom_call.1} parent=23 // pred_region
          %s158 = sand.u32 %s26, 1
          %s159 = scalar_lea.sflag [#allocation4], %s158
          %s160 = sand.u32 %s26, 1
          %s161 = smul.addr %s160, 8
          %s162 = scalar_lea.vmem [#allocation3], %s161
          %s164 = ssub.s32 128, 128
          %165 = vsyncadd %s159, %s164
          %s166 = smul.addr %s16, 2
          %s167 = smul.addr %s166, 64
          %s168 = scalar_lea.hbm %s0, %s167
          %s170 = sshll.u32 %s162, 4
          %s171 = int_to_ptr.vmem [resolvable:$true] %s170
          %173 = dma.hbm_to_vmem [thread:$0]  %s168, 128, %s171, %s159
        $region28: #{tpu_custom_call.1} parent=23 // pred_fallthru
          _
      $region24: #{tpu_custom_call.1} parent=5 // pred_fallthru
        _
      %p174 = scmp.le.s32.totalorder 1, %s16
      %p175 = scmp.lt.s32.totalorder %s16, 3
      %p176 = pnand %p174, %p175
      %p177 = pneg %p176
      // Predicated region
      $region29: #{tpu_custom_call.1} parent=5 // pred_check
        _
      $region30: #{tpu_custom_call.1} parent=5 // pred_check_branch
        %179 = sbr.rel (%p176) target = $region32
      $region31: #{tpu_custom_call.1} parent=5 // pred_region
        %s180 = ssub.s32 %s16, 1
        %s181 = sand.u32 %s29, 1
        %s182 = scalar_lea.sflag [#allocation4], %s181
        %s183 = sand.u32 %s29, 1
        %s184 = smul.addr %s183, 8
        %s185 = scalar_lea.vmem [#allocation3], %s184
        // Predicated region
        $region33: #{tpu_custom_call.1} parent=31 // pred_check
          %p186 = pneg %p42
        $region34: #{tpu_custom_call.1} parent=31 // pred_check_branch
          %188 = sbr.rel (%p186) target = $region36
        $region35: #{tpu_custom_call.1} parent=31 // pred_region
          %189 = dma.done %s182, 128
        $region36: #{tpu_custom_call.1} parent=31 // pred_fallthru
          _
        // Predicated region
        $region37: #{tpu_custom_call.1} parent=31 // pred_check
          %p190 = pneg %p63
        $region38: #{tpu_custom_call.1} parent=31 // pred_check_branch
          %192 = sbr.rel (%p190) target = $region40
        $region39: #{tpu_custom_call.1} parent=31 // pred_region
          %193 = dma.done [#allocation7], 12288
        $region40: #{tpu_custom_call.1} parent=31 // pred_fallthru
          _
        // Predicated region
        $region41: #{tpu_custom_call.1} parent=31 // pred_check
          %p194 = pneg %p84
        $region42: #{tpu_custom_call.1} parent=31 // pred_check_branch
          %196 = sbr.rel (%p194) target = $region44
        $region43: #{tpu_custom_call.1} parent=31 // pred_region
          %197 = dma.done [#allocation7], 1024
        $region44: #{tpu_custom_call.1} parent=31 // pred_fallthru
          _
        %s198 = sand.u32 %s29, 1
        %s199 = scalar_lea.sflag [#allocation4], %s198
        %s200 = sand.u32 %s29, 1
        %s201 = smul.addr %s200, 8
        %s202 = scalar_lea.vmem [#allocation3], %s201
        %p203 = pneg %p42
        %p204 = pneg %p39
        %p205 = pneg %p63
        %p206 = pneg %p60
        %p207 = pneg %p84
        %p208 = pneg %p81
        %p209 = pneg %p110
        %p210 = pneg %p107
        %s211 = sand.u32 %s97, 1
        %s212 = scalar_lea.sflag [#allocation5], %s211
        %s213 = sand.u32 %s97, 1
        %s214 = smul.addr %s213, 64
        %s215 = scalar_lea.vmem [#allocation9], %s214
        %v217 = vld [vmem:[%s185] sm:$0xff]
        %v218 = vld [vmem:[#allocation6] sm:$0xff]
        %v219 = vld [vmem:[#allocation6 + $0x8] sm:$0xff]
        %v220 = vld [vmem:[#allocation6 + $0x10] sm:$0xff]
        %v221 = vld [vmem:[#allocation6 + $0x18] sm:$0xff]
        %v222 = vld [vmem:[#allocation6 + $0x20] sm:$0xff]
        %v223 = vld [vmem:[#allocation6 + $0x28] sm:$0xff]
        %v224 = vld [vmem:[#allocation6 + $0x30] sm:$0xff]
        %v225 = vld [vmem:[#allocation6 + $0x38] sm:$0xff]
        %v226 = vld [vmem:[#allocation6 + $0x40] sm:$0xff]
        %v227 = vld [vmem:[#allocation6 + $0x48] sm:$0xff]
        %v228 = vld [vmem:[#allocation6 + $0x50] sm:$0xff]
        %v229 = vld [vmem:[#allocation6 + $0x58] sm:$0xff]
        %v230 = vld [vmem:[#allocation6 + $0x60] sm:$0xff]
        %v231 = vld [vmem:[#allocation6 + $0x68] sm:$0xff]
        %v232 = vld [vmem:[#allocation6 + $0x70] sm:$0xff]
        %v233 = vld [vmem:[#allocation6 + $0x78] sm:$0xff]
        %v234 = vld [vmem:[#allocation6 + $0x80] sm:$0xff]
        %v235 = vld [vmem:[#allocation6 + $0x88] sm:$0xff]
        %v236 = vld [vmem:[#allocation6 + $0x90] sm:$0xff]
        %v237 = vld [vmem:[#allocation6 + $0x98] sm:$0xff]
        %v238 = vld [vmem:[#allocation6 + $0xa0] sm:$0xff]
        %v239 = vld [vmem:[#allocation6 + $0xa8] sm:$0xff]
        %v240 = vld [vmem:[#allocation6 + $0xb0] sm:$0xff]
        %v241 = vld [vmem:[#allocation6 + $0xb8] sm:$0xff]
        %v242 = vld [vmem:[#allocation6 + $0xc0] sm:$0xff]
        %v243 = vld [vmem:[#allocation6 + $0xc8] sm:$0xff]
        %v244 = vld [vmem:[#allocation6 + $0xd0] sm:$0xff]
        %v245 = vld [vmem:[#allocation6 + $0xd8] sm:$0xff]
        %v246 = vld [vmem:[#allocation6 + $0xe0] sm:$0xff]
        %v247 = vld [vmem:[#allocation6 + $0xe8] sm:$0xff]
        %v248 = vld [vmem:[#allocation6 + $0xf0] sm:$0xff]
        %v249 = vld [vmem:[#allocation6 + $0xf8] sm:$0xff]
        %v250 = vld [vmem:[#allocation6 + $0x100] sm:$0xff]
        %v251 = vld [vmem:[#allocation6 + $0x108] sm:$0xff]
        %v252 = vld [vmem:[#allocation6 + $0x110] sm:$0xff]
        %v253 = vld [vmem:[#allocation6 + $0x118] sm:$0xff]
        %v254 = vld [vmem:[#allocation6 + $0x120] sm:$0xff]
        %v255 = vld [vmem:[#allocation6 + $0x128] sm:$0xff]
        %v256 = vld [vmem:[#allocation6 + $0x130] sm:$0xff]
        %v257 = vld [vmem:[#allocation6 + $0x138] sm:$0xff]
        %v258 = vld [vmem:[#allocation6 + $0x140] sm:$0xff]
        %v259 = vld [vmem:[#allocation6 + $0x148] sm:$0xff]
        %v260 = vld [vmem:[#allocation6 + $0x150] sm:$0xff]
        %v261 = vld [vmem:[#allocation6 + $0x158] sm:$0xff]
        %v262 = vld [vmem:[#allocation6 + $0x160] sm:$0xff]
        %v263 = vld [vmem:[#allocation6 + $0x168] sm:$0xff]
        %v264 = vld [vmem:[#allocation6 + $0x170] sm:$0xff]
        %v265 = vld [vmem:[#allocation6 + $0x178] sm:$0xff]
        %v266 = vld [vmem:[#allocation6 + $0x180] sm:$0xff]
        %v267 = vld [vmem:[#allocation6 + $0x188] sm:$0xff]
        %v268 = vld [vmem:[#allocation6 + $0x190] sm:$0xff]
        %v269 = vld [vmem:[#allocation6 + $0x198] sm:$0xff]
        %v270 = vld [vmem:[#allocation6 + $0x1a0] sm:$0xff]
        %v271 = vld [vmem:[#allocation6 + $0x1a8] sm:$0xff]
        %v272 = vld [vmem:[#allocation6 + $0x1b0] sm:$0xff]
        %v273 = vld [vmem:[#allocation6 + $0x1b8] sm:$0xff]
        %v274 = vld [vmem:[#allocation6 + $0x1c0] sm:$0xff]
        %v275 = vld [vmem:[#allocation6 + $0x1c8] sm:$0xff]
        %v276 = vld [vmem:[#allocation6 + $0x1d0] sm:$0xff]
        %v277 = vld [vmem:[#allocation6 + $0x1d8] sm:$0xff]
        %v278 = vld [vmem:[#allocation6 + $0x1e0] sm:$0xff]
        %v279 = vld [vmem:[#allocation6 + $0x1e8] sm:$0xff]
        %v280 = vld [vmem:[#allocation6 + $0x1f0] sm:$0xff]
        %v281 = vld [vmem:[#allocation6 + $0x1f8] sm:$0xff]
        %v282 = vld [vmem:[#allocation6 + $0x200] sm:$0xff]
        %v283 = vld [vmem:[#allocation6 + $0x208] sm:$0xff]
        %v284 = vld [vmem:[#allocation6 + $0x210] sm:$0xff]
        %v285 = vld [vmem:[#allocation6 + $0x218] sm:$0xff]
        %v286 = vld [vmem:[#allocation6 + $0x220] sm:$0xff]
        %v287 = vld [vmem:[#allocation6 + $0x228] sm:$0xff]
        %v288 = vld [vmem:[#allocation6 + $0x230] sm:$0xff]
        %v289 = vld [vmem:[#allocation6 + $0x238] sm:$0xff]
        %v290 = vld [vmem:[#allocation6 + $0x240] sm:$0xff]
        %v291 = vld [vmem:[#allocation6 + $0x248] sm:$0xff]
        %v292 = vld [vmem:[#allocation6 + $0x250] sm:$0xff]
        %v293 = vld [vmem:[#allocation6 + $0x258] sm:$0xff]
        %v294 = vld [vmem:[#allocation6 + $0x260] sm:$0xff]
        %v295 = vld [vmem:[#allocation6 + $0x268] sm:$0xff]
        %v296 = vld [vmem:[#allocation6 + $0x270] sm:$0xff]
        %v297 = vld [vmem:[#allocation6 + $0x278] sm:$0xff]
        %v298 = vld [vmem:[#allocation6 + $0x280] sm:$0xff]
        %v299 = vld [vmem:[#allocation6 + $0x288] sm:$0xff]
        %v300 = vld [vmem:[#allocation6 + $0x290] sm:$0xff]
        %v301 = vld [vmem:[#allocation6 + $0x298] sm:$0xff]
        %v302 = vld [vmem:[#allocation6 + $0x2a0] sm:$0xff]
        %v303 = vld [vmem:[#allocation6 + $0x2a8] sm:$0xff]
        %v304 = vld [vmem:[#allocation6 + $0x2b0] sm:$0xff]
        %v305 = vld [vmem:[#allocation6 + $0x2b8] sm:$0xff]
        %v306 = vld [vmem:[#allocation6 + $0x2c0] sm:$0xff]
        %v307 = vld [vmem:[#allocation6 + $0x2c8] sm:$0xff]
        %v308 = vld [vmem:[#allocation6 + $0x2d0] sm:$0xff]
        %v309 = vld [vmem:[#allocation6 + $0x2d8] sm:$0xff]
        %v310 = vld [vmem:[#allocation6 + $0x2e0] sm:$0xff]
        %v311 = vld [vmem:[#allocation6 + $0x2e8] sm:$0xff]
        %v312 = vld [vmem:[#allocation6 + $0x2f0] sm:$0xff]
        %v313 = vld [vmem:[#allocation6 + $0x2f8] sm:$0xff]
        %v315 = vunpack.c.l.b16 %v217
        %v316 = vunpack.c.h.b16 %v217
        %v317 = vpack.c.b16 %v315, %v315
        %v318 = vpack.c.b16 %v316, %v316
        %v417 = vunpack.c.l.b16 %v218
        %v418 = vunpack.c.h.b16 %v218
        %v419 = vunpack.c.l.b16 %v219
        %v420 = vunpack.c.h.b16 %v219
        %v421 = vunpack.c.l.b16 %v220
        %v422 = vunpack.c.h.b16 %v220
        %v423 = vunpack.c.l.b16 %v221
        %v424 = vunpack.c.h.b16 %v221
        %v425 = vunpack.c.l.b16 %v222
        %v426 = vunpack.c.h.b16 %v222
        %v427 = vunpack.c.l.b16 %v223
        %v428 = vunpack.c.h.b16 %v223
        %v429 = vunpack.c.l.b16 %v224
        %v430 = vunpack.c.h.b16 %v224
        %v431 = vunpack.c.l.b16 %v225
        %v432 = vunpack.c.h.b16 %v225
        %v433 = vunpack.c.l.b16 %v226
        %v434 = vunpack.c.h.b16 %v226
        %v435 = vunpack.c.l.b16 %v227
        %v436 = vunpack.c.h.b16 %v227
        %v437 = vunpack.c.l.b16 %v228
        %v438 = vunpack.c.h.b16 %v228
        %v439 = vunpack.c.l.b16 %v229
        %v440 = vunpack.c.h.b16 %v229
        %v441 = vunpack.c.l.b16 %v230
        %v442 = vunpack.c.h.b16 %v230
        %v443 = vunpack.c.l.b16 %v231
        %v444 = vunpack.c.h.b16 %v231
        %v445 = vunpack.c.l.b16 %v232
        %v446 = vunpack.c.h.b16 %v232
        %v447 = vunpack.c.l.b16 %v233
        %v448 = vunpack.c.h.b16 %v233
        %v449 = vunpack.c.l.b16 %v234
        %v450 = vunpack.c.h.b16 %v234
        %v451 = vunpack.c.l.b16 %v235
        %v452 = vunpack.c.h.b16 %v235
        %v453 = vunpack.c.l.b16 %v236
        %v454 = vunpack.c.h.b16 %v236
        %v455 = vunpack.c.l.b16 %v237
        %v456 = vunpack.c.h.b16 %v237
        %v457 = vunpack.c.l.b16 %v238
        %v458 = vunpack.c.h.b16 %v238
        %v459 = vunpack.c.l.b16 %v239
        %v460 = vunpack.c.h.b16 %v239
        %v461 = vunpack.c.l.b16 %v240
        %v462 = vunpack.c.h.b16 %v240
        %v463 = vunpack.c.l.b16 %v241
        %v464 = vunpack.c.h.b16 %v241
        %v465 = vunpack.c.l.b16 %v242
        %v466 = vunpack.c.h.b16 %v242
        %v467 = vunpack.c.l.b16 %v243
        %v468 = vunpack.c.h.b16 %v243
        %v469 = vunpack.c.l.b16 %v244
        %v470 = vunpack.c.h.b16 %v244
        %v471 = vunpack.c.l.b16 %v245
        %v472 = vunpack.c.h.b16 %v245
        %v473 = vunpack.c.l.b16 %v246
        %v474 = vunpack.c.h.b16 %v246
        %v475 = vunpack.c.l.b16 %v247
        %v476 = vunpack.c.h.b16 %v247
        %v477 = vunpack.c.l.b16 %v248
        %v478 = vunpack.c.h.b16 %v248
        %v479 = vunpack.c.l.b16 %v249
        %v480 = vunpack.c.h.b16 %v249
        %v481 = vunpack.c.l.b16 %v250
        %v482 = vunpack.c.h.b16 %v250
        %v483 = vunpack.c.l.b16 %v251
        %v484 = vunpack.c.h.b16 %v251
        %v485 = vunpack.c.l.b16 %v252
        %v486 = vunpack.c.h.b16 %v252
        %v487 = vunpack.c.l.b16 %v253
        %v488 = vunpack.c.h.b16 %v253
        %v489 = vunpack.c.l.b16 %v254
        %v490 = vunpack.c.h.b16 %v254
        %v491 = vunpack.c.l.b16 %v255
        %v492 = vunpack.c.h.b16 %v255
        %v493 = vunpack.c.l.b16 %v256
        %v494 = vunpack.c.h.b16 %v256
        %v495 = vunpack.c.l.b16 %v257
        %v496 = vunpack.c.h.b16 %v257
        %v497 = vunpack.c.l.b16 %v258
        %v498 = vunpack.c.h.b16 %v258
        %v499 = vunpack.c.l.b16 %v259
        %v500 = vunpack.c.h.b16 %v259
        %v501 = vunpack.c.l.b16 %v260
        %v502 = vunpack.c.h.b16 %v260
        %v503 = vunpack.c.l.b16 %v261
        %v504 = vunpack.c.h.b16 %v261
        %v505 = vunpack.c.l.b16 %v262
        %v506 = vunpack.c.h.b16 %v262
        %v507 = vunpack.c.l.b16 %v263
        %v508 = vunpack.c.h.b16 %v263
        %v509 = vunpack.c.l.b16 %v264
        %v510 = vunpack.c.h.b16 %v264
        %v511 = vunpack.c.l.b16 %v265
        %v512 = vunpack.c.h.b16 %v265
        %v513 = vunpack.c.l.b16 %v266
        %v514 = vunpack.c.h.b16 %v266
        %v515 = vunpack.c.l.b16 %v267
        %v516 = vunpack.c.h.b16 %v267
        %v517 = vunpack.c.l.b16 %v268
        %v518 = vunpack.c.h.b16 %v268
        %v519 = vunpack.c.l.b16 %v269
        %v520 = vunpack.c.h.b16 %v269
        %v521 = vunpack.c.l.b16 %v270
        %v522 = vunpack.c.h.b16 %v270
        %v523 = vunpack.c.l.b16 %v271
        %v524 = vunpack.c.h.b16 %v271
        %v525 = vunpack.c.l.b16 %v272
        %v526 = vunpack.c.h.b16 %v272
        %v527 = vunpack.c.l.b16 %v273
        %v528 = vunpack.c.h.b16 %v273
        %v529 = vunpack.c.l.b16 %v274
        %v530 = vunpack.c.h.b16 %v274
        %v531 = vunpack.c.l.b16 %v275
        %v532 = vunpack.c.h.b16 %v275
        %v533 = vunpack.c.l.b16 %v276
        %v534 = vunpack.c.h.b16 %v276
        %v535 = vunpack.c.l.b16 %v277
        %v536 = vunpack.c.h.b16 %v277
        %v537 = vunpack.c.l.b16 %v278
        %v538 = vunpack.c.h.b16 %v278
        %v539 = vunpack.c.l.b16 %v279
        %v540 = vunpack.c.h.b16 %v279
        %v541 = vunpack.c.l.b16 %v280
        %v542 = vunpack.c.h.b16 %v280
        %v543 = vunpack.c.l.b16 %v281
        %v544 = vunpack.c.h.b16 %v281
        %v545 = vunpack.c.l.b16 %v282
        %v546 = vunpack.c.h.b16 %v282
        %v547 = vunpack.c.l.b16 %v283
        %v548 = vunpack.c.h.b16 %v283
        %v549 = vunpack.c.l.b16 %v284
        %v550 = vunpack.c.h.b16 %v284
        %v551 = vunpack.c.l.b16 %v285
        %v552 = vunpack.c.h.b16 %v285
        %v553 = vunpack.c.l.b16 %v286
        %v554 = vunpack.c.h.b16 %v286
        %v555 = vunpack.c.l.b16 %v287
        %v556 = vunpack.c.h.b16 %v287
        %v557 = vunpack.c.l.b16 %v288
        %v558 = vunpack.c.h.b16 %v288
        %v559 = vunpack.c.l.b16 %v289
        %v560 = vunpack.c.h.b16 %v289
        %v561 = vunpack.c.l.b16 %v290
        %v562 = vunpack.c.h.b16 %v290
        %v563 = vunpack.c.l.b16 %v291
        %v564 = vunpack.c.h.b16 %v291
        %v565 = vunpack.c.l.b16 %v292
        %v566 = vunpack.c.h.b16 %v292
        %v567 = vunpack.c.l.b16 %v293
        %v568 = vunpack.c.h.b16 %v293
        %v569 = vunpack.c.l.b16 %v294
        %v570 = vunpack.c.h.b16 %v294
        %v571 = vunpack.c.l.b16 %v295
        %v572 = vunpack.c.h.b16 %v295
        %v573 = vunpack.c.l.b16 %v296
        %v574 = vunpack.c.h.b16 %v296
        %v575 = vunpack.c.l.b16 %v297
        %v576 = vunpack.c.h.b16 %v297
        %v577 = vunpack.c.l.b16 %v298
        %v578 = vunpack.c.h.b16 %v298
        %v579 = vunpack.c.l.b16 %v299
        %v580 = vunpack.c.h.b16 %v299
        %v581 = vunpack.c.l.b16 %v300
        %v582 = vunpack.c.h.b16 %v300
        %v583 = vunpack.c.l.b16 %v301
        %v584 = vunpack.c.h.b16 %v301
        %v585 = vunpack.c.l.b16 %v302
        %v586 = vunpack.c.h.b16 %v302
        %v587 = vunpack.c.l.b16 %v303
        %v588 = vunpack.c.h.b16 %v303
        %v589 = vunpack.c.l.b16 %v304
        %v590 = vunpack.c.h.b16 %v304
        %v591 = vunpack.c.l.b16 %v305
        %v592 = vunpack.c.h.b16 %v305
        %v593 = vunpack.c.l.b16 %v306
        %v594 = vunpack.c.h.b16 %v306
        %v595 = vunpack.c.l.b16 %v307
        %v596 = vunpack.c.h.b16 %v307
        %v597 = vunpack.c.l.b16 %v308
        %v598 = vunpack.c.h.b16 %v308
        %v599 = vunpack.c.l.b16 %v309
        %v600 = vunpack.c.h.b16 %v309
        %v601 = vunpack.c.l.b16 %v310
        %v602 = vunpack.c.h.b16 %v310
        %v603 = vunpack.c.l.b16 %v311
        %v604 = vunpack.c.h.b16 %v311
        %v605 = vunpack.c.l.b16 %v312
        %v606 = vunpack.c.h.b16 %v312
        %v607 = vunpack.c.l.b16 %v313
        %v608 = vunpack.c.h.b16 %v313
        %v609 = vpack.c.b16 %v423, %v417
        %v610 = vpack.c.b16 %v424, %v418
        %v611 = vpack.c.b16 %v425, %v419
        %v612 = vpack.c.b16 %v426, %v420
        %v613 = vpack.c.b16 %v427, %v421
        %v614 = vpack.c.b16 %v428, %v422
        %v615 = vpack.c.b16 %v435, %v429
        %v616 = vpack.c.b16 %v436, %v430
        %v617 = vpack.c.b16 %v437, %v431
        %v618 = vpack.c.b16 %v438, %v432
        %v619 = vpack.c.b16 %v439, %v433
        %v620 = vpack.c.b16 %v440, %v434
        %v621 = vpack.c.b16 %v447, %v441
        %v622 = vpack.c.b16 %v448, %v442
        %v623 = vpack.c.b16 %v449, %v443
        %v624 = vpack.c.b16 %v450, %v444
        %v625 = vpack.c.b16 %v451, %v445
        %v626 = vpack.c.b16 %v452, %v446
        %v627 = vpack.c.b16 %v459, %v453
        %v628 = vpack.c.b16 %v460, %v454
        %v629 = vpack.c.b16 %v461, %v455
        %v630 = vpack.c.b16 %v462, %v456
        %v631 = vpack.c.b16 %v463, %v457
        %v632 = vpack.c.b16 %v464, %v458
        %v633 = vpack.c.b16 %v471, %v465
        %v634 = vpack.c.b16 %v472, %v466
        %v635 = vpack.c.b16 %v473, %v467
        %v636 = vpack.c.b16 %v474, %v468
        %v637 = vpack.c.b16 %v475, %v469
        %v638 = vpack.c.b16 %v476, %v470
        %v639 = vpack.c.b16 %v483, %v477
        %v640 = vpack.c.b16 %v484, %v478
        %v641 = vpack.c.b16 %v485, %v479
        %v642 = vpack.c.b16 %v486, %v480
        %v643 = vpack.c.b16 %v487, %v481
        %v644 = vpack.c.b16 %v488, %v482
        %v645 = vpack.c.b16 %v495, %v489
        %v646 = vpack.c.b16 %v496, %v490
        %v647 = vpack.c.b16 %v497, %v491
        %v648 = vpack.c.b16 %v498, %v492
        %v649 = vpack.c.b16 %v499, %v493
        %v650 = vpack.c.b16 %v500, %v494
        %v651 = vpack.c.b16 %v507, %v501
        %v652 = vpack.c.b16 %v508, %v502
        %v653 = vpack.c.b16 %v509, %v503
        %v654 = vpack.c.b16 %v510, %v504
        %v655 = vpack.c.b16 %v511, %v505
        %v656 = vpack.c.b16 %v512, %v506
        %v657 = vpack.c.b16 %v519, %v513
        %v658 = vpack.c.b16 %v520, %v514
        %v659 = vpack.c.b16 %v521, %v515
        %v660 = vpack.c.b16 %v522, %v516
        %v661 = vpack.c.b16 %v523, %v517
        %v662 = vpack.c.b16 %v524, %v518
        %v663 = vpack.c.b16 %v531, %v525
        %v664 = vpack.c.b16 %v532, %v526
        %v665 = vpack.c.b16 %v533, %v527
        %v666 = vpack.c.b16 %v534, %v528
        %v667 = vpack.c.b16 %v535, %v529
        %v668 = vpack.c.b16 %v536, %v530
        %v669 = vpack.c.b16 %v543, %v537
        %v670 = vpack.c.b16 %v544, %v538
        %v671 = vpack.c.b16 %v545, %v539
        %v672 = vpack.c.b16 %v546, %v540
        %v673 = vpack.c.b16 %v547, %v541
        %v674 = vpack.c.b16 %v548, %v542
        %v675 = vpack.c.b16 %v555, %v549
        %v676 = vpack.c.b16 %v556, %v550
        %v677 = vpack.c.b16 %v557, %v551
        %v678 = vpack.c.b16 %v558, %v552
        %v679 = vpack.c.b16 %v559, %v553
        %v680 = vpack.c.b16 %v560, %v554
        %v681 = vpack.c.b16 %v567, %v561
        %v682 = vpack.c.b16 %v568, %v562
        %v683 = vpack.c.b16 %v569, %v563
        %v684 = vpack.c.b16 %v570, %v564
        %v685 = vpack.c.b16 %v571, %v565
        %v686 = vpack.c.b16 %v572, %v566
        %v687 = vpack.c.b16 %v579, %v573
        %v688 = vpack.c.b16 %v580, %v574
        %v689 = vpack.c.b16 %v581, %v575
        %v690 = vpack.c.b16 %v582, %v576
        %v691 = vpack.c.b16 %v583, %v577
        %v692 = vpack.c.b16 %v584, %v578
        %v693 = vpack.c.b16 %v591, %v585
        %v694 = vpack.c.b16 %v592, %v586
        %v695 = vpack.c.b16 %v593, %v587
        %v696 = vpack.c.b16 %v594, %v588
        %v697 = vpack.c.b16 %v595, %v589
        %v698 = vpack.c.b16 %v596, %v590
        %v699 = vpack.c.b16 %v603, %v597
        %v700 = vpack.c.b16 %v604, %v598
        %v701 = vpack.c.b16 %v605, %v599
        %v702 = vpack.c.b16 %v606, %v600
        %v703 = vpack.c.b16 %v607, %v601
        %v704 = vpack.c.b16 %v608, %v602
        %801 = vmatprep.subr.bf16.mxu0 %v610
        %802 = vmatpush1.bf16.msra.mxu0 %v609
        %803 = vmatprep.subr.bf16.mxu0 %v616
        %804 = vmatpush1.bf16.msra.mxu0 %v615
        %805 = vmatprep.subr.bf16.mxu0 %v622
        %806 = vmatpush1.bf16.msra.mxu0 %v621
        %807 = vmatprep.subr.bf16.mxu0 %v628
        %808 = vmatpush1.bf16.msra.mxu0 %v627
        %809 = vmatprep.subr.bf16.mxu0 %v634
        %810 = vmatpush1.bf16.msra.mxu0 %v633
        %811 = vmatprep.subr.bf16.mxu0 %v640
        %812 = vmatpush1.bf16.msra.mxu0 %v639
        %813 = vmatprep.subr.bf16.mxu0 %v646
        %814 = vmatpush1.bf16.msra.mxu0 %v645
        %815 = vmatprep.subr.bf16.mxu0 %v652
        %816 = vmatpush1.bf16.msra.mxu0 %v651
        %817 = vmatprep.subr.bf16.mxu0 %v658
        %818 = vmatpush1.bf16.msra.mxu0 %v657
        %819 = vmatprep.subr.bf16.mxu0 %v664
        %820 = vmatpush1.bf16.msra.mxu0 %v663
        %821 = vmatprep.subr.bf16.mxu0 %v670
        %822 = vmatpush1.bf16.msra.mxu0 %v669
        %823 = vmatprep.subr.bf16.mxu0 %v676
        %824 = vmatpush1.bf16.msra.mxu0 %v675
        %825 = vmatprep.subr.bf16.mxu0 %v682
        %826 = vmatpush1.bf16.msra.mxu0 %v681
        %827 = vmatprep.subr.bf16.mxu0 %v688
        %828 = vmatpush1.bf16.msra.mxu0 %v687
        %829 = vmatprep.subr.bf16.mxu0 %v694
        %830 = vmatpush1.bf16.msra.mxu0 %v693
        %831 = vmatprep.subr.bf16.mxu0 %v700
        %832 = vmatpush1.bf16.msra.mxu0 %v699
        %833 = vmatprep.mubr.bf16.mxu0 %v318
        %834 = vmatmul.mubr.bf16.gmra.mrb[0].mxu0 %v317
        %v835 = vpop.f32.mrb[0].mxu0
        %v836 = vadd.f32 0.0, %v835
        %v837 = vpop.f32.mrb[0].mxu0
        %v838 = vadd.f32 0.0, %v837
        %v839 = vpop.f32.mrb[0].mxu0
        %v840 = vpop.f32.mrb[0].mxu0
        %841 = vdwg.mxu0
        %842 = vmatprep.subr.bf16.mxu0 %v612
        %843 = vmatpush1.bf16.msra.mxu0 %v611
        %844 = vmatprep.subr.bf16.mxu0 %v618
        %845 = vmatpush1.bf16.msra.mxu0 %v617
        %846 = vmatprep.subr.bf16.mxu0 %v624
        %847 = vmatpush1.bf16.msra.mxu0 %v623
        %848 = vmatprep.subr.bf16.mxu0 %v630
        %849 = vmatpush1.bf16.msra.mxu0 %v629
        %850 = vmatprep.subr.bf16.mxu0 %v636
        %851 = vmatpush1.bf16.msra.mxu0 %v635
        %852 = vmatprep.subr.bf16.mxu0 %v642
        %853 = vmatpush1.bf16.msra.mxu0 %v641
        %854 = vmatprep.subr.bf16.mxu0 %v648
        %855 = vmatpush1.bf16.msra.mxu0 %v647
        %856 = vmatprep.subr.bf16.mxu0 %v654
        %857 = vmatpush1.bf16.msra.mxu0 %v653
        %858 = vmatprep.subr.bf16.mxu0 %v660
        %859 = vmatpush1.bf16.msra.mxu0 %v659
        %860 = vmatprep.subr.bf16.mxu0 %v666
        %861 = vmatpush1.bf16.msra.mxu0 %v665
        %862 = vmatprep.subr.bf16.mxu0 %v672
        %863 = vmatpush1.bf16.msra.mxu0 %v671
        %864 = vmatprep.subr.bf16.mxu0 %v678
        %865 = vmatpush1.bf16.msra.mxu0 %v677
        %866 = vmatprep.subr.bf16.mxu0 %v684
        %867 = vmatpush1.bf16.msra.mxu0 %v683
        %868 = vmatprep.subr.bf16.mxu0 %v690
        %869 = vmatpush1.bf16.msra.mxu0 %v689
        %870 = vmatprep.subr.bf16.mxu0 %v696
        %871 = vmatpush1.bf16.msra.mxu0 %v695
        %872 = vmatprep.subr.bf16.mxu0 %v702
        %873 = vmatpush1.bf16.msra.mxu0 %v701
        %874 = vmatprep.mubr.bf16.mxu0 %v318
        %875 = vmatmul.mubr.bf16.gmra.mrb[0].mxu0 %v317
        %v876 = vpop.f32.mrb[0].mxu0
        %v877 = vadd.f32 0.0, %v876
        %v878 = vpop.f32.mrb[0].mxu0
        %v879 = vadd.f32 0.0, %v878
        %v880 = vpop.f32.mrb[0].mxu0
        %v881 = vpop.f32.mrb[0].mxu0
        %882 = vdwg.mxu0
        %883 = vmatprep.subr.bf16.mxu0 %v614
        %884 = vmatpush1.bf16.msra.mxu0 %v613
        %885 = vmatprep.subr.bf16.mxu0 %v620
        %886 = vmatpush1.bf16.msra.mxu0 %v619
        %887 = vmatprep.subr.bf16.mxu0 %v626
        %888 = vmatpush1.bf16.msra.mxu0 %v625
        %889 = vmatprep.subr.bf16.mxu0 %v632
        %890 = vmatpush1.bf16.msra.mxu0 %v631
        %891 = vmatprep.subr.bf16.mxu0 %v638
        %892 = vmatpush1.bf16.msra.mxu0 %v637
        %893 = vmatprep.subr.bf16.mxu0 %v644
        %894 = vmatpush1.bf16.msra.mxu0 %v643
        %895 = vmatprep.subr.bf16.mxu0 %v650
        %896 = vmatpush1.bf16.msra.mxu0 %v649
        %897 = vmatprep.subr.bf16.mxu0 %v656
        %898 = vmatpush1.bf16.msra.mxu0 %v655
        %899 = vmatprep.subr.bf16.mxu0 %v662
        %900 = vmatpush1.bf16.msra.mxu0 %v661
        %901 = vmatprep.subr.bf16.mxu0 %v668
        %902 = vmatpush1.bf16.msra.mxu0 %v667
        %903 = vmatprep.subr.bf16.mxu0 %v674
        %904 = vmatpush1.bf16.msra.mxu0 %v673
        %905 = vmatprep.subr.bf16.mxu0 %v680
        %906 = vmatpush1.bf16.msra.mxu0 %v679
        %907 = vmatprep.subr.bf16.mxu0 %v686
        %908 = vmatpush1.bf16.msra.mxu0 %v685
        %909 = vmatprep.subr.bf16.mxu0 %v692
        %910 = vmatpush1.bf16.msra.mxu0 %v691
        %911 = vmatprep.subr.bf16.mxu0 %v698
        %912 = vmatpush1.bf16.msra.mxu0 %v697
        %913 = vmatprep.subr.bf16.mxu0 %v704
        %914 = vmatpush1.bf16.msra.mxu0 %v703
        %915 = vmatprep.mubr.bf16.mxu0 %v318
        %916 = vmatmul.mubr.bf16.gmra.mrb[0].mxu0 %v317
        %v917 = vpop.f32.mrb[0].mxu0
        %v918 = vadd.f32 0.0, %v917
        %v919 = vpop.f32.mrb[0].mxu0
        %v920 = vadd.f32 0.0, %v919
        %v921 = vpop.f32.mrb[0].mxu0
        %v922 = vpop.f32.mrb[0].mxu0
        %923 = vdwg.mxu0
        %924 = vst [vmem:[#allocation2] sm:$0xff] %v836
        %925 = vst [vmem:[#allocation2 + $0x8] sm:$0xff] %v838
        %926 = vst [vmem:[#allocation2 + $0x10] sm:$0xff] %v877
        %927 = vst [vmem:[#allocation2 + $0x18] sm:$0xff] %v879
        %928 = vst [vmem:[#allocation2 + $0x20] sm:$0xff] %v918
        %929 = vst [vmem:[#allocation2 + $0x28] sm:$0xff] %v920
        %v930 = vld [vmem:[#allocation2] sm:$0xff]
        %v931 = vld [vmem:[#allocation2 + $0x8] sm:$0xff]
        %933 = vrot.lane.b32.xlu0 %v930, 96
        %v934 = vpop.permute.xlu0 %933
        %936 = vrot.lane.b32.xlu0 %v930, 64
        %v937 = vpop.permute.xlu0 %936
        %939 = vrot.lane.b32.xlu0 %v930, 32
        %v940 = vpop.permute.xlu0 %939
        %943 = vrot.lane.b32.xlu0 %v931, 96
        %v944 = vpop.permute.xlu0 %943
        %946 = vrot.lane.b32.xlu0 %v931, 64
        %v947 = vpop.permute.xlu0 %946
        %949 = vrot.lane.b32.xlu0 %v931, 32
        %v950 = vpop.permute.xlu0 %949
        %v952 = vpack.c.bf16 %v934, %v930
        %v953 = vpack.c.bf16 %v940, %v937
        %v954 = vpack.c.bf16 %v944, %v931
        %v955 = vpack.c.bf16 %v950, %v947
        %v956 = vld [vmem:[#allocation2 + $0x10] sm:$0xff]
        %v957 = vld [vmem:[#allocation2 + $0x18] sm:$0xff]
        %959 = vrot.lane.b32.xlu0 %v956, 96
        %v960 = vpop.permute.xlu0 %959
        %962 = vrot.lane.b32.xlu0 %v956, 64
        %v963 = vpop.permute.xlu0 %962
        %965 = vrot.lane.b32.xlu0 %v956, 32
        %v966 = vpop.permute.xlu0 %965
        %969 = vrot.lane.b32.xlu0 %v957, 96
        %v970 = vpop.permute.xlu0 %969
        %972 = vrot.lane.b32.xlu0 %v957, 64
        %v973 = vpop.permute.xlu0 %972
        %975 = vrot.lane.b32.xlu0 %v957, 32
        %v976 = vpop.permute.xlu0 %975
        %v978 = vpack.c.bf16 %v960, %v956
        %v979 = vpack.c.bf16 %v966, %v963
        %v980 = vpack.c.bf16 %v970, %v957
        %v981 = vpack.c.bf16 %v976, %v973
        %v982 = vld [vmem:[#allocation2 + $0x20] sm:$0xff]
        %v983 = vld [vmem:[#allocation2 + $0x28] sm:$0xff]
        %985 = vrot.lane.b32.xlu0 %v982, 96
        %v986 = vpop.permute.xlu0 %985
        %988 = vrot.lane.b32.xlu0 %v982, 64
        %v989 = vpop.permute.xlu0 %988
        %991 = vrot.lane.b32.xlu0 %v982, 32
        %v992 = vpop.permute.xlu0 %991
        %995 = vrot.lane.b32.xlu0 %v983, 96
        %v996 = vpop.permute.xlu0 %995
        %998 = vrot.lane.b32.xlu0 %v983, 64
        %v999 = vpop.permute.xlu0 %998
        %1001 = vrot.lane.b32.xlu0 %v983, 32
        %v1002 = vpop.permute.xlu0 %1001
        %v1004 = vpack.c.bf16 %v986, %v982
        %v1005 = vpack.c.bf16 %v992, %v989
        %v1006 = vpack.c.bf16 %v996, %v983
        %v1007 = vpack.c.bf16 %v1002, %v999
        %vm1008 = vcmask 261120
        %v1010 = vsel %vm1008, %v952, 0
        %v1013 = vsel %vm1008, %v953, 0
        %v1016 = vsel %vm1008, %v954, 0
        %v1019 = vsel %vm1008, %v955, 0
        %v1022 = vsel %vm1008, %v978, 0
        %v1025 = vsel %vm1008, %v979, 0
        %v1028 = vsel %vm1008, %v980, 0
        %v1031 = vsel %vm1008, %v981, 0
        %1033 = vmatprep.subr.bf16.mxu0 0
        %1034 = vmatpush1.bf16.xpose.msra.mxu0 %v1022
        %1035 = vmatprep.subr.bf16.mxu0 0
        %1036 = vmatpush1.bf16.xpose.msra.mxu0 %v1025
        %1037 = vmatprep.subr.bf16.mxu0 0
        %1038 = vmatpush1.bf16.xpose.msra.mxu0 %v1028
        %1039 = vmatprep.subr.bf16.mxu0 0
        %1040 = vmatpush1.bf16.xpose.msra.mxu0 %v1031
        %1041 = vmatprep.subr.bf16.mxu0 0
        %1042 = vmatpush1.bf16.xpose.msra.mxu0 0
        %1043 = vmatprep.subr.bf16.mxu0 0
        %1044 = vmatpush1.bf16.xpose.msra.mxu0 0
        %1045 = vmatprep.subr.bf16.mxu0 0
        %1046 = vmatpush1.bf16.xpose.msra.mxu0 0
        %1047 = vmatprep.subr.bf16.mxu0 0
        %1048 = vmatpush1.bf16.xpose.msra.mxu0 0
        %1049 = vmatprep.subr.bf16.mxu0 0
        %1050 = vmatpush1.bf16.xpose.msra.mxu0 0
        %1051 = vmatprep.subr.bf16.mxu0 0
        %1052 = vmatpush1.bf16.xpose.msra.mxu0 0
        %1053 = vmatprep.subr.bf16.mxu0 0
        %1054 = vmatpush1.bf16.xpose.msra.mxu0 0
        %1055 = vmatprep.subr.bf16.mxu0 0
        %1056 = vmatpush1.bf16.xpose.msra.mxu0 0
        %1057 = vmatprep.subr.bf16.mxu0 0
        %1058 = vmatpush1.bf16.xpose.msra.mxu0 0
        %1059 = vmatprep.subr.bf16.mxu0 0
        %1060 = vmatpush1.bf16.xpose.msra.mxu0 0
        %1061 = vmatprep.subr.bf16.mxu0 0
        %1062 = vmatpush1.bf16.xpose.msra.mxu0 0
        %1063 = vmatprep.subr.bf16.mxu0 0
        %1064 = vmatpush1.bf16.xpose.msra.mxu0 0
        %1065 = vmatprep.mubr.bf16.mxu0 0
        %1066 = vmatmul.mubr.bf16.gmra.mrb[0].mxu0 %v1010
        %v1067 = vpop.f32.mrb[0].mxu0
        %v1068 = vadd.f32 0.0, %v1067
        %v1069 = vpop.f32.mrb[0].mxu0
        %v1070 = vpop.f32.mrb[0].mxu0
        %v1071 = vadd.f32 0.0, %v1070
        %v1072 = vpop.f32.mrb[0].mxu0
        %1073 = vmatprep.mubr.bf16.mxu0 0
        %1074 = vmatmul.mubr.bf16.gmra.mrb[0].mxu0 %v1013
        %v1075 = vpop.f32.mrb[0].mxu0
        %v1076 = vadd.f32 0.0, %v1075
        %v1077 = vpop.f32.mrb[0].mxu0
        %v1078 = vpop.f32.mrb[0].mxu0
        %v1079 = vadd.f32 0.0, %v1078
        %v1080 = vpop.f32.mrb[0].mxu0
        %1081 = vmatprep.mubr.bf16.mxu0 0
        %1082 = vmatmul.mubr.bf16.gmra.mrb[0].mxu0 %v1016
        %v1083 = vpop.f32.mrb[0].mxu0
        %v1084 = vadd.f32 0.0, %v1083
        %v1085 = vpop.f32.mrb[0].mxu0
        %v1086 = vpop.f32.mrb[0].mxu0
        %v1087 = vadd.f32 0.0, %v1086
        %v1088 = vpop.f32.mrb[0].mxu0
        %1089 = vmatprep.mubr.bf16.mxu0 0
        %1090 = vmatmul.mubr.bf16.gmra.mrb[0].mxu0 %v1019
        %v1091 = vpop.f32.mrb[0].mxu0
        %v1092 = vadd.f32 0.0, %v1091
        %v1093 = vpop.f32.mrb[0].mxu0
        %v1094 = vpop.f32.mrb[0].mxu0
        %v1095 = vadd.f32 0.0, %v1094
        %v1096 = vpop.f32.mrb[0].mxu0
        %1097 = vdwg.mxu0
        %v1098 = vmul.f32 %v1068, 0.17677669
        %v1099 = vmul.f32 %v1071, 0.17677669
        %v1100 = vmul.f32 %v1076, 0.17677669
        %v1101 = vmul.f32 %v1079, 0.17677669
        %v1102 = vmul.f32 %v1084, 0.17677669
        %v1103 = vmul.f32 %v1087, 0.17677669
        %v1104 = vmul.f32 %v1092, 0.17677669
        %v1105 = vmul.f32 %v1095, 0.17677669
        %v1106 = vld [vmem:[#allocation8] sm:$0xff]
        %v1107 = vld [vmem:[#allocation8 + $0x8] sm:$0xff]
        %v1108 = vld [vmem:[#allocation8 + $0x10] sm:$0xff]
        %v1109 = vld [vmem:[#allocation8 + $0x18] sm:$0xff]
        %v1110 = vld [vmem:[#allocation8 + $0x20] sm:$0xff]
        %v1111 = vld [vmem:[#allocation8 + $0x28] sm:$0xff]
        %v1112 = vld [vmem:[#allocation8 + $0x30] sm:$0xff]
        %v1113 = vld [vmem:[#allocation8 + $0x38] sm:$0xff]
        %v1114 = vadd.f32 %v1098, %v1106
        %v1115 = vadd.f32 %v1099, %v1107
        %v1116 = vadd.f32 %v1100, %v1108
        %v1117 = vadd.f32 %v1101, %v1109
        %v1118 = vadd.f32 %v1102, %v1110
        %v1119 = vadd.f32 %v1103, %v1111
        %v1120 = vadd.f32 %v1104, %v1112
        %v1121 = vadd.f32 %v1105, %v1113
        %vm1122 = vcmask 523264
        %v1123 = vsel %vm1122, %v1114, -inf
        %1124 = vmax.xlane.f32.xlu0 %v1123
        %v1125 = vpop.xlane.xlu0 %1124
        %v1126 = vsel %vm1122, %v1115, -inf
        %1127 = vmax.xlane.f32.xlu0 %v1126
        %v1128 = vpop.xlane.xlu0 %1127
        %v1129 = vsel %vm1122, %v1116, -inf
        %1130 = vmax.xlane.f32.xlu0 %v1129
        %v1131 = vpop.xlane.xlu0 %1130
        %v1132 = vsel %vm1122, %v1117, -inf
        %1133 = vmax.xlane.f32.xlu0 %v1132
        %v1134 = vpop.xlane.xlu0 %1133
        %v1135 = vsel %vm1122, %v1118, -inf
        %1136 = vmax.xlane.f32.xlu0 %v1135
        %v1137 = vpop.xlane.xlu0 %1136
        %v1138 = vsel %vm1122, %v1119, -inf
        %1139 = vmax.xlane.f32.xlu0 %v1138
        %v1140 = vpop.xlane.xlu0 %1139
        %v1141 = vsel %vm1122, %v1120, -inf
        %1142 = vmax.xlane.f32.xlu0 %v1141
        %v1143 = vpop.xlane.xlu0 %1142
        %v1144 = vsel %vm1122, %v1121, -inf
        %1145 = vmax.xlane.f32.xlu0 %v1144
        %v1146 = vpop.xlane.xlu0 %1145
        %v1147 = vsub.f32 %v1114, %v1125
        %v1148 = vsub.f32 %v1115, %v1128
        %v1149 = vsub.f32 %v1116, %v1131
        %v1150 = vsub.f32 %v1117, %v1134
        %v1151 = vsub.f32 %v1118, %v1137
        %v1152 = vsub.f32 %v1119, %v1140
        %v1153 = vsub.f32 %v1120, %v1143
        %v1154 = vsub.f32 %v1121, %v1146
        %v1155 = vmul.f32 %v1147, 1.442695
        %v1156 = vpow.pop %v1155
        %v1157 = vmul.f32 %v1148, 1.442695
        %v1158 = vpow.pop %v1157
        %v1159 = vmul.f32 %v1149, 1.442695
        %v1160 = vpow.pop %v1159
        %v1161 = vmul.f32 %v1150, 1.442695
        %v1162 = vpow.pop %v1161
        %v1163 = vmul.f32 %v1151, 1.442695
        %v1164 = vpow.pop %v1163
        %v1165 = vmul.f32 %v1152, 1.442695
        %v1166 = vpow.pop %v1165
        %v1167 = vmul.f32 %v1153, 1.442695
        %v1168 = vpow.pop %v1167
        %v1169 = vmul.f32 %v1154, 1.442695
        %v1170 = vpow.pop %v1169
        %v1171 = vsel %vm1122, %v1156, 0.0
        %1172 = vadd.xlane.f32.xlu0 %v1171
        %v1173 = vpop.xlane.xlu0 %1172
        %v1174 = vsel %vm1122, %v1158, 0.0
        %1175 = vadd.xlane.f32.xlu0 %v1174
        %v1176 = vpop.xlane.xlu0 %1175
        %v1177 = vsel %vm1122, %v1160, 0.0
        %1178 = vadd.xlane.f32.xlu0 %v1177
        %v1179 = vpop.xlane.xlu0 %1178
        %v1180 = vsel %vm1122, %v1162, 0.0
        %1181 = vadd.xlane.f32.xlu0 %v1180
        %v1182 = vpop.xlane.xlu0 %1181
        %v1183 = vsel %vm1122, %v1164, 0.0
        %1184 = vadd.xlane.f32.xlu0 %v1183
        %v1185 = vpop.xlane.xlu0 %1184
        %v1186 = vsel %vm1122, %v1166, 0.0
        %1187 = vadd.xlane.f32.xlu0 %v1186
        %v1188 = vpop.xlane.xlu0 %1187
        %v1189 = vsel %vm1122, %v1168, 0.0
        %1190 = vadd.xlane.f32.xlu0 %v1189
        %v1191 = vpop.xlane.xlu0 %1190
        %v1192 = vsel %vm1122, %v1170, 0.0
        %1193 = vadd.xlane.f32.xlu0 %v1192
        %v1194 = vpop.xlane.xlu0 %1193
        %v1195 = vrcp.pop %v1173
        %v1196 = vrcp.pop %v1176
        %v1197 = vrcp.pop %v1179
        %v1198 = vrcp.pop %v1182
        %v1199 = vrcp.pop %v1185
        %v1200 = vrcp.pop %v1188
        %v1201 = vrcp.pop %v1191
        %v1202 = vrcp.pop %v1194
        %v1203 = vmul.f32 %v1156, %v1195
        %v1204 = vmul.f32 %v1158, %v1196
        %v1205 = vmul.f32 %v1160, %v1197
        %v1206 = vmul.f32 %v1162, %v1198
        %v1207 = vmul.f32 %v1164, %v1199
        %v1208 = vmul.f32 %v1166, %v1200
        %v1209 = vmul.f32 %v1168, %v1201
        %v1210 = vmul.f32 %v1170, %v1202
        %v1211 = vpack.c.bf16 %v1204, %v1203
        %v1212 = vpack.c.bf16 %v1206, %v1205
        %v1213 = vpack.c.bf16 %v1208, %v1207
        %v1214 = vpack.c.bf16 %v1210, %v1209
        %v1216 = vsel %vm1122, %v1211, 0
        %v1219 = vsel %vm1122, %v1212, 0
        %v1222 = vsel %vm1122, %v1213, 0
        %v1225 = vsel %vm1122, %v1214, 0
        %1227 = vmatprep.subr.bf16.mxu0 0
        %1228 = vmatpush1.bf16.msra.mxu0 %v1004
        %1229 = vmatprep.subr.bf16.mxu0 0
        %1230 = vmatpush1.bf16.msra.mxu0 %v1005
        %1231 = vmatprep.subr.bf16.mxu0 0
        %1232 = vmatpush1.bf16.msra.mxu0 %v1006
        %1233 = vmatprep.subr.bf16.mxu0 0
        %1234 = vmatpush1.bf16.msra.mxu0 %v1007
        %1235 = vmatprep.subr.bf16.mxu0 0
        %1236 = vmatpush1.bf16.msra.mxu0 0
        %1237 = vmatprep.subr.bf16.mxu0 0
        %1238 = vmatpush1.bf16.msra.mxu0 0
        %1239 = vmatprep.subr.bf16.mxu0 0
        %1240 = vmatpush1.bf16.msra.mxu0 0
        %1241 = vmatprep.subr.bf16.mxu0 0
        %1242 = vmatpush1.bf16.msra.mxu0 0
        %1243 = vmatprep.subr.bf16.mxu0 0
        %1244 = vmatpush1.bf16.msra.mxu0 0
        %1245 = vmatprep.subr.bf16.mxu0 0
        %1246 = vmatpush1.bf16.msra.mxu0 0
        %1247 = vmatprep.subr.bf16.mxu0 0
        %1248 = vmatpush1.bf16.msra.mxu0 0
        %1249 = vmatprep.subr.bf16.mxu0 0
        %1250 = vmatpush1.bf16.msra.mxu0 0
        %1251 = vmatprep.subr.bf16.mxu0 0
        %1252 = vmatpush1.bf16.msra.mxu0 0
        %1253 = vmatprep.subr.bf16.mxu0 0
        %1254 = vmatpush1.bf16.msra.mxu0 0
        %1255 = vmatprep.subr.bf16.mxu0 0
        %1256 = vmatpush1.bf16.msra.mxu0 0
        %1257 = vmatprep.subr.bf16.mxu0 0
        %1258 = vmatpush1.bf16.msra.mxu0 0
        %1259 = vmatprep.mubr.bf16.mxu0 0
        %1260 = vmatmul.mubr.bf16.gmra.mrb[0].mxu0 %v1216
        %v1261 = vpop.f32.mrb[0].mxu0
        %v1262 = vadd.f32 0.0, %v1261
        %v1263 = vpop.f32.mrb[0].mxu0
        %v1264 = vpop.f32.mrb[0].mxu0
        %v1265 = vadd.f32 0.0, %v1264
        %v1266 = vpop.f32.mrb[0].mxu0
        %1267 = vmatprep.mubr.bf16.mxu0 0
        %1268 = vmatmul.mubr.bf16.gmra.mrb[0].mxu0 %v1219
        %v1269 = vpop.f32.mrb[0].mxu0
        %v1270 = vadd.f32 0.0, %v1269
        %v1271 = vpop.f32.mrb[0].mxu0
        %v1272 = vpop.f32.mrb[0].mxu0
        %v1273 = vadd.f32 0.0, %v1272
        %v1274 = vpop.f32.mrb[0].mxu0
        %1275 = vmatprep.mubr.bf16.mxu0 0
        %1276 = vmatmul.mubr.bf16.gmra.mrb[0].mxu0 %v1222
        %v1277 = vpop.f32.mrb[0].mxu0
        %v1278 = vadd.f32 0.0, %v1277
        %v1279 = vpop.f32.mrb[0].mxu0
        %v1280 = vpop.f32.mrb[0].mxu0
        %v1281 = vadd.f32 0.0, %v1280
        %v1282 = vpop.f32.mrb[0].mxu0
        %1283 = vmatprep.mubr.bf16.mxu0 0
        %1284 = vmatmul.mubr.bf16.gmra.mrb[0].mxu0 %v1225
        %v1285 = vpop.f32.mrb[0].mxu0
        %v1286 = vadd.f32 0.0, %v1285
        %v1287 = vpop.f32.mrb[0].mxu0
        %v1288 = vpop.f32.mrb[0].mxu0
        %v1289 = vadd.f32 0.0, %v1288
        %v1290 = vpop.f32.mrb[0].mxu0
        %1291 = vdwg.mxu0
        %1292 = vst.msk [vmem:[%s215] sm:$0xff] %vm1008, %v1262
        %1293 = vst.msk [vmem:[%s215 + $0x8] sm:$0xff] %vm1008, %v1265
        %1294 = vst.msk [vmem:[%s215 + $0x10] sm:$0xff] %vm1008, %v1270
        %1295 = vst.msk [vmem:[%s215 + $0x18] sm:$0xff] %vm1008, %v1273
        %1296 = vst.msk [vmem:[%s215 + $0x20] sm:$0xff] %vm1008, %v1278
        %1297 = vst.msk [vmem:[%s215 + $0x28] sm:$0xff] %vm1008, %v1281
        %1298 = vst.msk [vmem:[%s215 + $0x30] sm:$0xff] %vm1008, %v1286
        %1299 = vst.msk [vmem:[%s215 + $0x38] sm:$0xff] %vm1008, %v1289
        %s1300 = sand.u32 %s97, 1
        %s1301 = scalar_lea.sflag [#allocation5], %s1300
        %s1302 = sand.u32 %s97, 1
        %s1303 = smul.addr %s1302, 64
        %s1304 = scalar_lea.vmem [#allocation9], %s1303
        // Predicated region
        $region45: #{tpu_custom_call.1} parent=31 // pred_check
          %p1305 = pneg %p107
        $region46: #{tpu_custom_call.1} parent=31 // pred_check_branch
          %1307 = sbr.rel (%p1305) target = $region48
        $region47: #{tpu_custom_call.1} parent=31 // pred_region
          %s1309 = ssub.s32 1024, 1024
          %1310 = vsyncadd %s1301, %s1309
          %s1311 = smul.addr %s21, 8
          %s1312 = smul.addr %s1311, 128
          %s1313 = scalar_lea.hbm %s3, %s1312
          %s1314 = sshll.u32 %s1304, 4
          %s1315 = int_to_ptr.vmem [resolvable:$true] %s1314
          %1320 = dma.vmem_to_hbm [thread:$0]  %s1315, 1024, %s1313, %s1301, 128, 128, 8
        $region48: #{tpu_custom_call.1} parent=31 // pred_fallthru
          _
      $region32: #{tpu_custom_call.1} parent=5 // pred_fallthru
        _
      %p1321 = scmp.le.s32.totalorder 2, %s16
      // Predicated region
      $region49: #{tpu_custom_call.1} parent=5 // pred_check
        %p1322 = pneg %p1321
      $region50: #{tpu_custom_call.1} parent=5 // pred_check_branch
        %1324 = sbr.rel (%p1322) target = $region52
      $region51: #{tpu_custom_call.1} parent=5 // pred_region
        %s1325 = ssub.s32 %s16, 2
        // Predicated region
        $region53: #{tpu_custom_call.1} parent=51 // pred_check
          %p1326 = pneg %p113
        $region54: #{tpu_custom_call.1} parent=51 // pred_check_branch
          %1328 = sbr.rel (%p1326) target = $region56
        $region55: #{tpu_custom_call.1} parent=51 // pred_region
          %s1329 = sand.u32 %s98, 1
          %s1330 = scalar_lea.sflag [#allocation5], %s1329
          %s1331 = sand.u32 %s98, 1
          %s1332 = smul.addr %s1331, 64
          %s1333 = scalar_lea.vmem [#allocation9], %s1332
          %1334 = dma.done %s1330, 1024
        $region56: #{tpu_custom_call.1} parent=51 // pred_fallthru
          _
      $region52: #{tpu_custom_call.1} parent=5 // pred_fallthru
        _
    $region6: #{tpu_custom_call.1} parent=1 // loop_footer
      %s20 = sadd.s32 1, %s16
    $region7: #{tpu_custom_call.1} parent=1 // loop_footer_branch
      %15 = sbr.rel target = $region3
    $region8: #{tpu_custom_call.1} parent=1 // loop_exit
      _
    %1335 = vsyncpa [#allocation4], 1
    %s1336 = scalar_lea.sflag [#allocation4], 1
    %1337 = vsyncpa %s1336, 1
    %1338 = vsyncpa [#allocation7], 1
    %1339 = vsyncpa [#allocation5], 1
    %s1340 = scalar_lea.sflag [#allocation5], 1
    %1341 = vsyncpa %s1340, 1

</llo_original>
